<compile_context>
chip_gen: v7x
topology: tpu7x:2x2x1
jax: 0.10.0
libtpu: 0.0.40
codegen_flags: <defaults>
</compile_context>

<pallas_src>
import functools

import jax
import jax.numpy as jnp
from jax.experimental import pallas as pl
from jax.experimental.pallas import tpu as pltpu


def _channel_attention_kernel(x_ref, w1t_ref, w2t_ref, o_ref, *, hw):
    # x_ref: (Bt, C, HW)   w1t_ref: (C, Cr)   w2t_ref: (Cr, C)   o_ref: (Bt, C, HW)
    x = x_ref[...]                                           # native dtype, no copy
    bt = x.shape[0]

    # AdaptiveAvgPool2d(1) / AdaptiveMaxPool2d(1): per-image spatial reductions.
    # Sum accumulates in f32 (accuracy for bf16 inputs); max is exact in-dtype.
    avg = jnp.sum(x, axis=-1, dtype=jnp.float32) * (1.0 / hw)     # (Bt, C) f32
    mx = jnp.max(x, axis=-1).astype(jnp.float32)                  # (Bt, C) f32

    # Shared MLP evaluated once on the stacked (avg; max) rows, on the MXU.
    pooled = jnp.concatenate([avg, mx], axis=0)                   # (2*Bt, C)
    h = jnp.maximum(
        jnp.dot(pooled, w1t_ref[...], preferred_element_type=jnp.float32), 0.0
    )                                                             # (2*Bt, Cr)
    mlp_out = jnp.dot(h, w2t_ref[...], preferred_element_type=jnp.float32)  # (2*Bt, C)

    gate = jax.nn.sigmoid(mlp_out[:bt] + mlp_out[bt:])            # (Bt, C) f32
    # Gating multiply in the input's native dtype (bf16 VALU on v6e/v7x).
    o_ref[...] = x * gate[:, :, None].astype(x.dtype)


def _tpu_vmem_bytes():
    """Physical per-core VMEM; defaults to 128 MiB if the query is unavailable."""
    try:
        info = pltpu.get_tpu_info()
        return int(getattr(info, "vmem_capacity_bytes", 128 << 20))
    except Exception:
        return 128 << 20


def _pick_batch_tile(batch, per_image_bytes, *, target_bytes, two_cores):
    """Largest divisor Bt of `batch` with Bt*per_image <= target.

    On the 2-TensorCore generation (v7x) keep >= 2 grid steps (prefer an even
    step count) so both cores get balanced work; on v5e/v6e allow Bt == batch.
    """
    candidates = []
    for bt in range(1, batch + 1):
        if batch % bt:
            continue
        if bt > 1 and bt * per_image_bytes > target_bytes:
            continue
        candidates.append(bt)
    if two_cores and batch > 1:
        multi = [bt for bt in candidates if batch // bt >= 2]
        if multi:
            even = [bt for bt in multi if (batch // bt) % 2 == 0]
            candidates = even if even else multi
    return max(candidates)


def channel_attention(x, w1, w2):
    """x: (B, C, H, W); w1: (C//r, C) [fc1 (out,in)]; w2: (C, C//r) [fc2 (out,in)]."""
    B, C, H, W = x.shape
    Cr = w1.shape[0]
    HW = H * W

    # Flattened lane-dense view; NO padding / slicing round-trip. A block last
    # dim equal to the full array dim is legal even when HW % 128 != 0.
    x_flat = x.reshape(B, C, HW)

    itemsize = jnp.dtype(x.dtype).itemsize
    per_image_bytes = C * HW * itemsize

    # Generation-aware budget: v7x has 64 MiB VMEM/TC and 2 TCs; v5e/v6e 128 MiB, 1 TC.
    vmem_phys = _tpu_vmem_bytes()
    small_vmem = vmem_phys <= (64 << 20)          # v7x-like
    two_cores = small_vmem
    target_bytes = (4 << 20) if small_vmem else (8 << 20)
    vmem_cap = (40 << 20) if small_vmem else (48 << 20)

    Bt = _pick_batch_tile(
        B, per_image_bytes, target_bytes=target_bytes, two_cores=two_cores
    )
    # TODO(synk): if a single (1, C, HW) image block ever exceeds the per-core
    # VMEM budget (or B // Bt < 2 on v7x with huge images), switch to a
    # two-pass structure: kernel A with an "arbitrary" HW-tile axis
    # accumulating partial sum/max into (B, C) via pl.when init/finalize, the
    # tiny MLP+sigmoid in plain XLA, and kernel B applying the gate.

    block_bytes = Bt * per_image_bytes
    w_bytes = 2 * C * Cr * 4
    # double-buffered input + output blocks + weights + headroom
    vmem_need = 4 * block_bytes + 4 * w_bytes + (2 << 20)
    vmem_limit = int(min(max(vmem_need, 32 << 20), vmem_cap))

    # Transposed weights so the in-kernel MLP is two plain row-major MXU dots.
    w1t = jnp.asarray(w1, jnp.float32).T                     # (C, Cr)
    w2t = jnp.asarray(w2, jnp.float32).T                     # (Cr, C)

    kernel = functools.partial(_channel_attention_kernel, hw=HW)

    out_flat = pl.pallas_call(
        kernel,
        out_shape=jax.ShapeDtypeStruct((B, C, HW), x.dtype),
        grid_spec=pltpu.PrefetchScalarGridSpec(
            num_scalar_prefetch=0,
            grid=(B // Bt,),
            in_specs=[
                pl.BlockSpec((Bt, C, HW), lambda b: (b, 0, 0)),
                pl.BlockSpec((C, Cr), lambda b: (0, 0)),
                pl.BlockSpec((Cr, C), lambda b: (0, 0)),
            ],
            out_specs=pl.BlockSpec((Bt, C, HW), lambda b: (b, 0, 0)),
        ),
        compiler_params=pltpu.CompilerParams(
            dimension_semantics=("parallel",),
            vmem_limit_bytes=vmem_limit,
        ),
        # Note: callers that no longer need x could pass
        # input_output_aliases={0: 0} to drop the extra HBM output buffer.
    )(x_flat, w1t, w2t)

    return out_flat.reshape(B, C, H, W)


def channel_attention_ref(x, w1, w2):
    # Pure-JAX reference mirroring the PyTorch forward exactly.
    avg = jnp.mean(x, axis=(2, 3))                           # (B, C)
    mx = jnp.max(x, axis=(2, 3))                             # (B, C)

    def mlp(v):
        h = jnp.maximum(v @ w1.T, 0.0)                       # (B, Cr)
        return h @ w2.T                                      # (B, C)

    gate = jax.nn.sigmoid(mlp(avg) + mlp(mx))                # (B, C)
    return x * gate[:, :, None, None]


if __name__ == "__main__":
    B, C, H, W = 2, 32, 16, 16
    ratio = 8
    Cr = C // ratio

    key = jax.random.PRNGKey(0)
    kx, k1, k2 = jax.random.split(key, 3)

    x = jax.random.normal(kx, (B, C, H, W), dtype=jnp.float32)
    # Conv2d(kernel_size=1, bias=False) weights are (out, in, 1, 1); keep the
    # equivalent (out, in) dense matrices.
    w1 = jax.random.normal(k1, (Cr, C), dtype=jnp.float32) * 0.1
    w2 = jax.random.normal(k2, (C, Cr), dtype=jnp.float32) * 0.1

    out = jax.block_until_ready(channel_attention(x, w1, w2))
    ref = channel_attention_ref(x, w1, w2)

    assert out.shape == (B, C, H, W)
    err = float(jnp.max(jnp.abs(out - ref)))
    assert jnp.allclose(out, ref, atol=1e-5, rtol=1e-5), f"max abs err {err}"

    print("KERNEL_OK")
</pallas_src>

<mosaic_0001>
module attributes {stable_mosaic.version = 11 : i64} {
  func.func @_channel_attention_kernel(%arg0: i32, %arg1: memref<2x32x256xf32, #tpu.memory_space<vmem>>, %arg2: memref<32x4xf32, #tpu.memory_space<vmem>>, %arg3: memref<4x32xf32, #tpu.memory_space<vmem>>, %arg4: memref<2x32x256xf32, #tpu.memory_space<vmem>>) attributes {dimension_semantics = [#tpu.dimension_semantics<parallel>], iteration_bounds = array<i64: 1>, scalar_prefetch = 0 : i64, scratch_operands = 0 : i64, tpu.core_type = #tpu.core_type<tc>, window_params = [{transform_indices = @transform_0, window_bounds = array<i64: 2, 32, 256>}, {pipeline_mode = #tpu.pipeline_mode<synchronous>, transform_indices = @transform_1, window_bounds = array<i64: 32, 4>}, {pipeline_mode = #tpu.pipeline_mode<synchronous>, transform_indices = @transform_2, window_bounds = array<i64: 4, 32>}, {transform_indices = @transform_3, window_bounds = array<i64: 2, 32, 256>}]} {
    %c0 = arith.constant 0 : index
    %c0_0 = arith.constant 0 : index
    %c0_1 = arith.constant 0 : index
    %0 = vector.load %arg1[%c0, %c0_0, %c0_1] : memref<2x32x256xf32, #tpu.memory_space<vmem>>, vector<2x32x256xf32>
    %cst = arith.constant dense<0.000000e+00> : vector<2x32xf32>
    %1 = vector.multi_reduction <add>, %0, %cst [2] : vector<2x32x256xf32> to vector<2x32xf32>
    %cst_2 = arith.constant 3.906250e-03 : f32
    %2 = vector.broadcast %cst_2 : f32 to vector<2x32xf32>
    %3 = arith.mulf %1, %2 : vector<2x32xf32>
    %cst_3 = arith.constant dense<0xFF800000> : vector<2x32xf32>
    %4 = vector.multi_reduction <maximumf>, %0, %cst_3 [2] : vector<2x32x256xf32> to vector<2x32xf32>
    %5 = tpu.concatenate %3, %4 in 0 : vector<2x32xf32>, vector<2x32xf32> -> vector<4x32xf32>
    %c0_4 = arith.constant 0 : index
    %c0_5 = arith.constant 0 : index
    %6 = vector.load %arg2[%c0_4, %c0_5] : memref<32x4xf32, #tpu.memory_space<vmem>>, vector<32x4xf32>
    %cst_6 = arith.constant dense<0.000000e+00> : vector<4x4xf32>
    %7 = tpu.matmul %5, %6, %cst_6 {dimension_numbers = #tpu.dot_dimension_numbers<[1], [0], [0], [1], [0, 0, 1, 1], [], []>} : vector<4x32xf32>, vector<32x4xf32>, vector<4x4xf32> -> vector<4x4xf32>
    %cst_7 = arith.constant 0.000000e+00 : f32
    %8 = vector.broadcast %cst_7 : f32 to vector<4x4xf32>
    %9 = arith.maximumf %7, %8 : vector<4x4xf32>
    %c0_8 = arith.constant 0 : index
    %c0_9 = arith.constant 0 : index
    %10 = vector.load %arg3[%c0_8, %c0_9] : memref<4x32xf32, #tpu.memory_space<vmem>>, vector<4x32xf32>
    %cst_10 = arith.constant dense<0.000000e+00> : vector<4x32xf32>
    %11 = tpu.matmul %9, %10, %cst_10 {dimension_numbers = #tpu.dot_dimension_numbers<[1], [0], [0], [1], [0, 0, 1, 1], [], []>} : vector<4x4xf32>, vector<4x32xf32>, vector<4x32xf32> -> vector<4x32xf32>
    %12 = vector.extract_strided_slice %11 {offsets = [0, 0], sizes = [2, 32], strides = [1, 1]} : vector<4x32xf32> to vector<2x32xf32>
    %13 = vector.extract_strided_slice %11 {offsets = [2, 0], sizes = [2, 32], strides = [1, 1]} : vector<4x32xf32> to vector<2x32xf32>
    %14 = arith.addf %12, %13 : vector<2x32xf32>
    %15 = arith.negf %14 : vector<2x32xf32>
    %16 = math.exp %15 : vector<2x32xf32>
    %cst_11 = arith.constant 1.000000e+00 : f32
    %17 = vector.broadcast %cst_11 : f32 to vector<2x32xf32>
    %18 = arith.addf %17, %16 : vector<2x32xf32>
    %19 = arith.divf %17, %18 : vector<2x32xf32>
    %20 = vector.shape_cast %19 : vector<2x32xf32> to vector<2x32x1xf32>
    %21 = vector.broadcast %20 : vector<2x32x1xf32> to vector<2x32x256xf32>
    %22 = arith.mulf %0, %21 : vector<2x32x256xf32>
    %c0_12 = arith.constant 0 : index
    %c0_13 = arith.constant 0 : index
    %c0_14 = arith.constant 0 : index
    %23 = vector.load %arg4[%c0_12, %c0_13, %c0_14] : memref<2x32x256xf32, #tpu.memory_space<vmem>>, vector<2x32x256xf32>
    tpu.vector_store %arg4[%c0_12, %c0_13, %c0_14], %22 {strides = array<i32>} : memref<2x32x256xf32, #tpu.memory_space<vmem>>, vector<2x32x256xf32>,
    return
  }
  func.func @transform_0(%arg0: i32) -> (i32, i32, i32) {
    %c0_i32 = arith.constant 0 : i32
    %c0_i32_0 = arith.constant 0 : i32
    %c0_i32_1 = arith.constant 0 : i32
    return %arg0, %c0_i32, %c0_i32_0 : i32, i32, i32
  }
  func.func @transform_1(%arg0: i32) -> (i32, i32) {
    %c0_i32 = arith.constant 0 : i32
    %c0_i32_0 = arith.constant 0 : i32
    %c0_i32_1 = arith.constant 0 : i32
    return %c0_i32, %c0_i32_0 : i32, i32
  }
  func.func @transform_2(%arg0: i32) -> (i32, i32) {
    %c0_i32 = arith.constant 0 : i32
    %c0_i32_0 = arith.constant 0 : i32
    %c0_i32_1 = arith.constant 0 : i32
    return %c0_i32, %c0_i32_0 : i32, i32
  }
  func.func @transform_3(%arg0: i32) -> (i32, i32, i32) {
    %c0_i32 = arith.constant 0 : i32
    %c0_i32_0 = arith.constant 0 : i32
    %c0_i32_1 = arith.constant 0 : i32
    return %arg0, %c0_i32, %c0_i32_0 : i32, i32, i32
  }
}

</mosaic_0001>

<llo_original>
// kernel: tpu_custom_call.1
$region0: #{tpu_custom_call.1}
  #allocation0 [shape = 'u32[]', space=smem, size = 0x4, offset = 0x4, fixed_abs, tag = 'smem constant byte address 0x4 - core index']
  #allocation1 [shape = 'u32[144,128]{1,0:T(1,128)}', space=vmem, size = 0x12000, scoped, tag = 'internal scratch']
  %s0 = inlined_call_operand.hbm [shape: f32[2,32,256], index: 0, kind: input, shape index: {}]
  %s1 = inlined_call_operand.vmem [shape: f32[32,4], index: 1, kind: input, shape index: {}]
  %s2 = inlined_call_operand.vmem [shape: f32[4,32], index: 2, kind: input, shape index: {}]
  %s3 = inlined_call_operand.hbm [shape: f32[2,32,256], index: 3, kind: output, shape index: {}]
  %s4 = sld [smem:[#allocation0]]
  $region26: #{tpu_custom_call.1} parent=0
    _
  %s6 = ssub.s32 1, %s4
  %s7 = scalar_select 0, %s6, %s4
  $region1: #{tpu_custom_call.1} parent=0
    #allocation2 [shape = 'u8[65536]{0}', space=vmem, size = 0x10000, scoped, tag = 'input window, operand 0, single buffered']
    #allocation3 [shape = 's32[1]{0}', space=sflag, size = 0x4, scoped, tag = 'scoped memory for tpu_custom_call.1']
    #allocation4 [shape = 's32[1]{0}', space=sflag, size = 0x4, scoped, tag = 'scoped memory for tpu_custom_call.1']
    #allocation5 [shape = 'u8[65536]{0}', space=vmem, size = 0x10000, scoped, tag = 'output window, operand 0, single buffered']
    %8 = vsyncpa [#allocation3], 0
    %9 = vsyncpa [#allocation4], 0
    // Predicated region
    $region2: #{tpu_custom_call.1} parent=1 // pred_check
      _
    $region3: #{tpu_custom_call.1} parent=1 // pred_check_branch
      %11 = sbr.rel (0) target = $region5
    $region4: #{tpu_custom_call.1} parent=1 // pred_region
      %s13 = ssub.s32 2048, 2048
      %14 = vsyncadd [#allocation3], %s13
      %s15 = sshll.u32 [#allocation2], 4
      %s16 = int_to_ptr.vmem [resolvable:$true] %s15
      %21 = dma.hbm_to_vmem [thread:$0]  %s0, 2048, %s16, [#allocation3], 256, 256, 16
    $region5: #{tpu_custom_call.1} parent=1 // pred_fallthru
      _
    // Predicated region
    $region6: #{tpu_custom_call.1} parent=1 // pred_check
      _
    $region7: #{tpu_custom_call.1} parent=1 // pred_check_branch
      %23 = sbr.rel (0) target = $region9
    $region8: #{tpu_custom_call.1} parent=1 // pred_region
      _
    $region9: #{tpu_custom_call.1} parent=1 // pred_fallthru
      _
    // Predicated region
    $region10: #{tpu_custom_call.1} parent=1 // pred_check
      _
    $region11: #{tpu_custom_call.1} parent=1 // pred_check_branch
      %25 = sbr.rel (0) target = $region13
    $region12: #{tpu_custom_call.1} parent=1 // pred_region
      _
    $region13: #{tpu_custom_call.1} parent=1 // pred_fallthru
      _
    // Predicated region
    $region14: #{tpu_custom_call.1} parent=1 // pred_check
      _
    $region15: #{tpu_custom_call.1} parent=1 // pred_check_branch
      %27 = sbr.rel (0) target = $region17
    $region16: #{tpu_custom_call.1} parent=1 // pred_region
      %28 = dma.done [#allocation3], 2048
    $region17: #{tpu_custom_call.1} parent=1 // pred_fallthru
      _
    %v29 = vld [vmem:[#allocation2] sm:$0xff]
    %v30 = vld [vmem:[#allocation2 + $0x8] sm:$0xff]
    %v31 = vld [vmem:[#allocation2 + $0x10] sm:$0xff]
    %v32 = vld [vmem:[#allocation2 + $0x18] sm:$0xff]
    %v33 = vld [vmem:[#allocation2 + $0x20] sm:$0xff]
    %v34 = vld [vmem:[#allocation2 + $0x28] sm:$0xff]
    %v35 = vld [vmem:[#allocation2 + $0x30] sm:$0xff]
    %v36 = vld [vmem:[#allocation2 + $0x38] sm:$0xff]
    %v37 = vld [vmem:[#allocation2 + $0x40] sm:$0xff]
    %v38 = vld [vmem:[#allocation2 + $0x48] sm:$0xff]
    %v39 = vld [vmem:[#allocation2 + $0x50] sm:$0xff]
    %v40 = vld [vmem:[#allocation2 + $0x58] sm:$0xff]
    %v41 = vld [vmem:[#allocation2 + $0x60] sm:$0xff]
    %v42 = vld [vmem:[#allocation2 + $0x68] sm:$0xff]
    %v43 = vld [vmem:[#allocation2 + $0x70] sm:$0xff]
    %v44 = vld [vmem:[#allocation2 + $0x78] sm:$0xff]
    %v45 = vadd.f32 %v29, %v30
    %46 = vadd.xlane.f32.xlu0 %v45
    %v47 = vpop.xlane.xlu0 %46
    %v48 = vadd.f32 %v31, %v32
    %49 = vadd.xlane.f32.xlu0 %v48
    %v50 = vpop.xlane.xlu0 %49
    %v51 = vadd.f32 %v33, %v34
    %52 = vadd.xlane.f32.xlu0 %v51
    %v53 = vpop.xlane.xlu0 %52
    %v54 = vadd.f32 %v35, %v36
    %55 = vadd.xlane.f32.xlu0 %v54
    %v56 = vpop.xlane.xlu0 %55
    %v57 = vadd.f32 %v37, %v38
    %58 = vadd.xlane.f32.xlu0 %v57
    %v59 = vpop.xlane.xlu0 %58
    %v60 = vadd.f32 %v39, %v40
    %61 = vadd.xlane.f32.xlu0 %v60
    %v62 = vpop.xlane.xlu0 %61
    %v63 = vadd.f32 %v41, %v42
    %64 = vadd.xlane.f32.xlu0 %v63
    %v65 = vpop.xlane.xlu0 %64
    %v66 = vadd.f32 %v43, %v44
    %67 = vadd.xlane.f32.xlu0 %v66
    %v68 = vpop.xlane.xlu0 %67
    %v69 = vmul.f32 %v47, 0.00390625
    %v70 = vmul.f32 %v50, 0.00390625
    %v71 = vmul.f32 %v53, 0.00390625
    %v72 = vmul.f32 %v56, 0.00390625
    %v73 = vmul.f32 %v59, 0.00390625
    %v74 = vmul.f32 %v62, 0.00390625
    %v75 = vmul.f32 %v65, 0.00390625
    %v76 = vmul.f32 %v68, 0.00390625
    %v77 = vmax.f32 %v29, %v30
    %78 = vmax.xlane.f32.xlu0 %v77
    %v79 = vpop.xlane.xlu0 %78
    %v80 = vmax.f32 %v31, %v32
    %81 = vmax.xlane.f32.xlu0 %v80
    %v82 = vpop.xlane.xlu0 %81
    %v83 = vmax.f32 %v33, %v34
    %84 = vmax.xlane.f32.xlu0 %v83
    %v85 = vpop.xlane.xlu0 %84
    %v86 = vmax.f32 %v35, %v36
    %87 = vmax.xlane.f32.xlu0 %v86
    %v88 = vpop.xlane.xlu0 %87
    %v89 = vmax.f32 %v37, %v38
    %90 = vmax.xlane.f32.xlu0 %v89
    %v91 = vpop.xlane.xlu0 %90
    %v92 = vmax.f32 %v39, %v40
    %93 = vmax.xlane.f32.xlu0 %v92
    %v94 = vpop.xlane.xlu0 %93
    %v95 = vmax.f32 %v41, %v42
    %96 = vmax.xlane.f32.xlu0 %v95
    %v97 = vpop.xlane.xlu0 %96
    %v98 = vmax.f32 %v43, %v44
    %99 = vmax.xlane.f32.xlu0 %v98
    %v100 = vpop.xlane.xlu0 %99
    %v109 = vlaneseq
    %v110 = vand.u32 %v109, 127
    %v111 = vlaneseq
    %v112 = vshrl.u32 %v111, 7
    %v113 = vsub.s32 %v110, %v112
    %v114 = vrot.slane %v69, %v113
    %v115 = vadd.s32 %v110, 4294967288
    %v116 = vlaneseq
    %v117 = vshrl.u32 %v116, 7
    %v118 = vsub.s32 %v115, %v117
    %v119 = vrot.slane %v70, %v118
    %vm120 = vcmask 130112
    %v121 = vsel %vm120, %v119, %v114
    %v122 = vadd.s32 %v110, 4294967280
    %v123 = vlaneseq
    %v124 = vshrl.u32 %v123, 7
    %v125 = vsub.s32 %v122, %v124
    %v126 = vrot.slane %v71, %v125
    %vm127 = vcmask 195712
    %v128 = vsel %vm127, %v126, %v121
    %v129 = vadd.s32 %v110, 4294967272
    %v130 = vlaneseq
    %v131 = vshrl.u32 %v130, 7
    %v132 = vsub.s32 %v129, %v131
    %v133 = vrot.slane %v72, %v132
    %vm134 = vcmask 261312
    %v135 = vsel %vm134, %v133, %v128
    %v136 = vlaneseq
    %v137 = vshrl.u32 %v136, 7
    %v138 = vsub.s32 %v110, %v137
    %v139 = vrot.slane %v73, %v138
    %v140 = vlaneseq
    %v141 = vshrl.u32 %v140, 7
    %v142 = vsub.s32 %v115, %v141
    %v143 = vrot.slane %v74, %v142
    %v144 = vsel %vm120, %v143, %v139
    %v145 = vlaneseq
    %v146 = vshrl.u32 %v145, 7
    %v147 = vsub.s32 %v122, %v146
    %v148 = vrot.slane %v75, %v147
    %v149 = vsel %vm127, %v148, %v144
    %v150 = vlaneseq
    %v151 = vshrl.u32 %v150, 7
    %v152 = vsub.s32 %v129, %v151
    %v153 = vrot.slane %v76, %v152
    %v154 = vsel %vm134, %v153, %v149
    %vm155 = vcmask 1041409
    %v156 = vsel %vm155, %v154, %v135
    %v166 = vlaneseq
    %v167 = vshrl.u32 %v166, 7
    %v168 = vsub.s32 %v110, %v167
    %v169 = vrot.slane %v79, %v168
    %v170 = vlaneseq
    %v171 = vshrl.u32 %v170, 7
    %v172 = vsub.s32 %v115, %v171
    %v173 = vrot.slane %v82, %v172
    %v174 = vsel %vm120, %v173, %v169
    %v175 = vlaneseq
    %v176 = vshrl.u32 %v175, 7
    %v177 = vsub.s32 %v122, %v176
    %v178 = vrot.slane %v85, %v177
    %v179 = vsel %vm127, %v178, %v174
    %v180 = vlaneseq
    %v181 = vshrl.u32 %v180, 7
    %v182 = vsub.s32 %v129, %v181
    %v183 = vrot.slane %v88, %v182
    %v184 = vsel %vm134, %v183, %v179
    %v185 = vlaneseq
    %v186 = vshrl.u32 %v185, 7
    %v187 = vsub.s32 %v110, %v186
    %v188 = vrot.slane %v91, %v187
    %v189 = vlaneseq
    %v190 = vshrl.u32 %v189, 7
    %v191 = vsub.s32 %v115, %v190
    %v192 = vrot.slane %v94, %v191
    %v193 = vsel %vm120, %v192, %v188
    %v194 = vlaneseq
    %v195 = vshrl.u32 %v194, 7
    %v196 = vsub.s32 %v122, %v195
    %v197 = vrot.slane %v97, %v196
    %v198 = vsel %vm127, %v197, %v193
    %v199 = vlaneseq
    %v200 = vshrl.u32 %v199, 7
    %v201 = vsub.s32 %v129, %v200
    %v202 = vrot.slane %v100, %v201
    %v203 = vsel %vm134, %v202, %v198
    %vm204 = vcmask 1043459
    %v205 = vsel %vm204, %v203, %v184
    %vm207 = vcmask 1041408
    %v208 = vsel %vm207, %v156, %v205
    %v209 = vld [vmem:[%s1] sm:$0xff]
    %v210 = vld [vmem:[%s1 + $0x8] sm:$0xff]
    %v211 = vld [vmem:[%s1 + $0x10] sm:$0xff]
    %v212 = vld [vmem:[%s1 + $0x18] sm:$0xff]
    %vm213 = vcmask 261120
    %v215 = vsel %vm213, %v208, 0
    %217 = vmatprep.subr.mxu0 0.0
    %218 = vmatpush1.msra.mxu0 %v209
    %219 = vmatprep.subr.mxu0 0.0
    %220 = vmatpush1.msra.mxu0 %v210
    %221 = vmatprep.subr.mxu0 0.0
    %222 = vmatpush1.msra.mxu0 %v211
    %223 = vmatprep.subr.mxu0 0.0
    %224 = vmatpush1.msra.mxu0 %v212
    %225 = vmatprep.subr.mxu0 0.0
    %226 = vmatpush1.msra.mxu0 0.0
    %227 = vmatprep.subr.mxu0 0.0
    %228 = vmatpush1.msra.mxu0 0.0
    %229 = vmatprep.subr.mxu0 0.0
    %230 = vmatpush1.msra.mxu0 0.0
    %231 = vmatprep.subr.mxu0 0.0
    %232 = vmatpush1.msra.mxu0 0.0
    %233 = vmatprep.subr.mxu0 0.0
    %234 = vmatpush1.msra.mxu0 0.0
    %235 = vmatprep.subr.mxu0 0.0
    %236 = vmatpush1.msra.mxu0 0.0
    %237 = vmatprep.subr.mxu0 0.0
    %238 = vmatpush1.msra.mxu0 0.0
    %239 = vmatprep.subr.mxu0 0.0
    %240 = vmatpush1.msra.mxu0 0.0
    %241 = vmatprep.subr.mxu0 0.0
    %242 = vmatpush1.msra.mxu0 0.0
    %243 = vmatprep.subr.mxu0 0.0
    %244 = vmatpush1.msra.mxu0 0.0
    %245 = vmatprep.subr.mxu0 0.0
    %246 = vmatpush1.msra.mxu0 0.0
    %247 = vmatprep.subr.mxu0 0.0
    %248 = vmatpush1.msra.mxu0 0.0
    %249 = vmatprep.subr.mxu0 0.0
    %250 = vmatpush1.msra.mxu0 0.0
    %251 = vmatprep.subr.mxu0 0.0
    %252 = vmatpush1.msra.mxu0 0.0
    %253 = vmatprep.subr.mxu0 0.0
    %254 = vmatpush1.msra.mxu0 0.0
    %255 = vmatprep.subr.mxu0 0.0
    %256 = vmatpush1.msra.mxu0 0.0
    %257 = vmatprep.subr.mxu0 0.0
    %258 = vmatpush1.msra.mxu0 0.0
    %259 = vmatprep.subr.mxu0 0.0
    %260 = vmatpush1.msra.mxu0 0.0
    %261 = vmatprep.subr.mxu0 0.0
    %262 = vmatpush1.msra.mxu0 0.0
    %263 = vmatprep.subr.mxu0 0.0
    %264 = vmatpush1.msra.mxu0 0.0
    %265 = vmatprep.subr.mxu0 0.0
    %266 = vmatpush1.msra.mxu0 0.0
    %267 = vmatprep.subr.mxu0 0.0
    %268 = vmatpush1.msra.mxu0 0.0
    %269 = vmatprep.subr.mxu0 0.0
    %270 = vmatpush1.msra.mxu0 0.0
    %271 = vmatprep.subr.mxu0 0.0
    %272 = vmatpush1.msra.mxu0 0.0
    %273 = vmatprep.subr.mxu0 0.0
    %274 = vmatpush1.msra.mxu0 0.0
    %275 = vmatprep.subr.mxu0 0.0
    %276 = vmatpush1.msra.mxu0 0.0
    %277 = vmatprep.subr.mxu0 0.0
    %278 = vmatpush1.msra.mxu0 0.0
    %279 = vmatprep.subr.mxu0 0.0
    %280 = vmatpush1.msra.mxu0 0.0
    %281 = vmatprep.mubr.f32.mxu0 0.0
    %282 = vmatmul.mubr.f32.gmra.mrb[0].mxu0 %v215
    %v283 = vpop.f32.mrb[0].mxu0
    %v284 = vadd.f32 0.0, %v283
    %v285 = vpop.f32.mrb[0].mxu0
    %286 = vdwg.mxu0
    %v287 = vmax.f32 %v284, 0.0
    %v288 = vld [vmem:[%s2] sm:$0xf]
    %vm289 = vcmask 31744
    %v291 = vsel %vm289, %v287, 0
    %vm293 = vcmask 1043456
    %v295 = vsel %vm293, %v288, 0
    %297 = vmatprep.subr.mxu0 0.0
    %298 = vmatpush1.msra.mxu0 %v295
    %299 = vmatprep.subr.mxu0 0.0
    %300 = vmatpush1.msra.mxu0 0.0
    %301 = vmatprep.subr.mxu0 0.0
    %302 = vmatpush1.msra.mxu0 0.0
    %303 = vmatprep.subr.mxu0 0.0
    %304 = vmatpush1.msra.mxu0 0.0
    %305 = vmatprep.subr.mxu0 0.0
    %306 = vmatpush1.msra.mxu0 0.0
    %307 = vmatprep.subr.mxu0 0.0
    %308 = vmatpush1.msra.mxu0 0.0
    %309 = vmatprep.subr.mxu0 0.0
    %310 = vmatpush1.msra.mxu0 0.0
    %311 = vmatprep.subr.mxu0 0.0
    %312 = vmatpush1.msra.mxu0 0.0
    %313 = vmatprep.subr.mxu0 0.0
    %314 = vmatpush1.msra.mxu0 0.0
    %315 = vmatprep.subr.mxu0 0.0
    %316 = vmatpush1.msra.mxu0 0.0
    %317 = vmatprep.subr.mxu0 0.0
    %318 = vmatpush1.msra.mxu0 0.0
    %319 = vmatprep.subr.mxu0 0.0
    %320 = vmatpush1.msra.mxu0 0.0
    %321 = vmatprep.subr.mxu0 0.0
    %322 = vmatpush1.msra.mxu0 0.0
    %323 = vmatprep.subr.mxu0 0.0
    %324 = vmatpush1.msra.mxu0 0.0
    %325 = vmatprep.subr.mxu0 0.0
    %326 = vmatpush1.msra.mxu0 0.0
    %327 = vmatprep.subr.mxu0 0.0
    %328 = vmatpush1.msra.mxu0 0.0
    %329 = vmatprep.subr.mxu0 0.0
    %330 = vmatpush1.msra.mxu0 0.0
    %331 = vmatprep.subr.mxu0 0.0
    %332 = vmatpush1.msra.mxu0 0.0
    %333 = vmatprep.subr.mxu0 0.0
    %334 = vmatpush1.msra.mxu0 0.0
    %335 = vmatprep.subr.mxu0 0.0
    %336 = vmatpush1.msra.mxu0 0.0
    %337 = vmatprep.subr.mxu0 0.0
    %338 = vmatpush1.msra.mxu0 0.0
    %339 = vmatprep.subr.mxu0 0.0
    %340 = vmatpush1.msra.mxu0 0.0
    %341 = vmatprep.subr.mxu0 0.0
    %342 = vmatpush1.msra.mxu0 0.0
    %343 = vmatprep.subr.mxu0 0.0
    %344 = vmatpush1.msra.mxu0 0.0
    %345 = vmatprep.subr.mxu0 0.0
    %346 = vmatpush1.msra.mxu0 0.0
    %347 = vmatprep.subr.mxu0 0.0
    %348 = vmatpush1.msra.mxu0 0.0
    %349 = vmatprep.subr.mxu0 0.0
    %350 = vmatpush1.msra.mxu0 0.0
    %351 = vmatprep.subr.mxu0 0.0
    %352 = vmatpush1.msra.mxu0 0.0
    %353 = vmatprep.subr.mxu0 0.0
    %354 = vmatpush1.msra.mxu0 0.0
    %355 = vmatprep.subr.mxu0 0.0
    %356 = vmatpush1.msra.mxu0 0.0
    %357 = vmatprep.subr.mxu0 0.0
    %358 = vmatpush1.msra.mxu0 0.0
    %359 = vmatprep.subr.mxu0 0.0
    %360 = vmatpush1.msra.mxu0 0.0
    %361 = vmatprep.mubr.f32.mxu0 0.0
    %362 = vmatmul.mubr.f32.gmra.mrb[0].mxu0 %v291
    %v363 = vpop.f32.mrb[0].mxu0
    %v364 = vadd.f32 0.0, %v363
    %v365 = vpop.f32.mrb[0].mxu0
    %366 = vdwg.mxu0
    %v368 = vrot.slane %v364, 2
    %v370 = vadd.f32 %v364, %v368
    %v371 = vxor.u32 %v370, 2147483648
    %v372 = vmul.f32 %v371, 1.442695
    %v373 = vpow.pop %v372
    %v374 = vadd.f32 %v373, 1.0
    %v375 = vrcp.pop %v374
    %v376 = vmul.f32 1.0, %v375
    %v377 = vlaneseq
    %v378 = vshrl.u32 %v377, 7
    %v379 = vsub.s32 0, %v378
    %v380 = vrot.slane %v376, %v379
    %382 = vbcast.lane.b32.xlu0 %v380, 256
    %v383 = vpop.permute.xlu0 %382
    %s385 = sor.u32 256, 8
    %386 = vbcast.lane.b32.xlu0 %v380, %s385
    %v387 = vpop.permute.xlu0 %386
    %s389 = sor.u32 256, 16
    %390 = vbcast.lane.b32.xlu0 %v380, %s389
    %v391 = vpop.permute.xlu0 %390
    %s393 = sor.u32 256, 24
    %394 = vbcast.lane.b32.xlu0 %v380, %s393
    %v395 = vpop.permute.xlu0 %394
    %v396 = vlaneseq
    %v397 = vshrl.u32 %v396, 7
    %v398 = vsub.s32 1, %v397
    %v399 = vrot.slane %v376, %v398
    %401 = vbcast.lane.b32.xlu0 %v399, 256
    %v402 = vpop.permute.xlu0 %401
    %s404 = sor.u32 256, 8
    %405 = vbcast.lane.b32.xlu0 %v399, %s404
    %v406 = vpop.permute.xlu0 %405
    %s408 = sor.u32 256, 16
    %409 = vbcast.lane.b32.xlu0 %v399, %s408
    %v410 = vpop.permute.xlu0 %409
    %s412 = sor.u32 256, 24
    %413 = vbcast.lane.b32.xlu0 %v399, %s412
    %v414 = vpop.permute.xlu0 %413
    %v415 = vmul.f32 %v29, %v383
    %v416 = vmul.f32 %v30, %v383
    %v417 = vmul.f32 %v31, %v387
    %v418 = vmul.f32 %v32, %v387
    %v419 = vmul.f32 %v33, %v391
    %v420 = vmul.f32 %v34, %v391
    %v421 = vmul.f32 %v35, %v395
    %v422 = vmul.f32 %v36, %v395
    %v423 = vmul.f32 %v37, %v402
    %v424 = vmul.f32 %v38, %v402
    %v425 = vmul.f32 %v39, %v406
    %v426 = vmul.f32 %v40, %v406
    %v427 = vmul.f32 %v41, %v410
    %v428 = vmul.f32 %v42, %v410
    %v429 = vmul.f32 %v43, %v414
    %v430 = vmul.f32 %v44, %v414
    %431 = vst [vmem:[#allocation5] sm:$0xff] %v415
    %432 = vst [vmem:[#allocation5 + $0x8] sm:$0xff] %v416
    %433 = vst [vmem:[#allocation5 + $0x10] sm:$0xff] %v417
    %434 = vst [vmem:[#allocation5 + $0x18] sm:$0xff] %v418
    %435 = vst [vmem:[#allocation5 + $0x20] sm:$0xff] %v419
    %436 = vst [vmem:[#allocation5 + $0x28] sm:$0xff] %v420
    %437 = vst [vmem:[#allocation5 + $0x30] sm:$0xff] %v421
    %438 = vst [vmem:[#allocation5 + $0x38] sm:$0xff] %v422
    %439 = vst [vmem:[#allocation5 + $0x40] sm:$0xff] %v423
    %440 = vst [vmem:[#allocation5 + $0x48] sm:$0xff] %v424
    %441 = vst [vmem:[#allocation5 + $0x50] sm:$0xff] %v425
    %442 = vst [vmem:[#allocation5 + $0x58] sm:$0xff] %v426
    %443 = vst [vmem:[#allocation5 + $0x60] sm:$0xff] %v427
    %444 = vst [vmem:[#allocation5 + $0x68] sm:$0xff] %v428
    %445 = vst [vmem:[#allocation5 + $0x70] sm:$0xff] %v429
    %446 = vst [vmem:[#allocation5 + $0x78] sm:$0xff] %v430
    // Predicated region
    $region18: #{tpu_custom_call.1} parent=1 // pred_check
      _
    $region19: #{tpu_custom_call.1} parent=1 // pred_check_branch
      %448 = sbr.rel (0) target = $region21
    $region20: #{tpu_custom_call.1} parent=1 // pred_region
      %s450 = ssub.s32 2048, 2048
      %451 = vsyncadd [#allocation4], %s450
      %s452 = sshll.u32 [#allocation5], 4
      %s453 = int_to_ptr.vmem [resolvable:$true] %s452
      %458 = dma.vmem_to_hbm [thread:$0]  %s453, 2048, %s3, [#allocation4], 256, 256, 16
    $region21: #{tpu_custom_call.1} parent=1 // pred_fallthru
      _
    // Predicated region
    $region22: #{tpu_custom_call.1} parent=1 // pred_check
      _
    $region23: #{tpu_custom_call.1} parent=1 // pred_check_branch
      %460 = sbr.rel (0) target = $region25
    $region24: #{tpu_custom_call.1} parent=1 // pred_region
      %461 = dma.done [#allocation4], 2048
    $region25: #{tpu_custom_call.1} parent=1 // pred_fallthru
      _
    %462 = vsyncpa [#allocation3], 1
    %463 = vsyncpa [#allocation4], 1

</llo_original>
